<compile_context>
chip_gen: v5e
topology: v5e:2x2
jax: 0.10.0
libtpu: 0.0.40
codegen_flags: <defaults>
</compile_context>

<pallas_src>
import functools

import jax
import jax.numpy as jnp
from jax.experimental import pallas as pl
from jax.experimental.pallas import tpu as pltpu

NEG_SLOPE = 0.2                     # GATConv default negative_slope
MASK_FILL = -1e30                   # finite mask fill (safe with online softmax)
USE_BF16_MXU = True                 # bf16 MXU operands, f32 accumulation
VMEM_LIMIT_BYTES = 48 * 1024 * 1024 # > v5e 16 MiB scoped default, < v7x 64 MiB physical


def _round_up(n, m):
    return ((n + m - 1) // m) * m


def _compute_dtype():
    return jnp.bfloat16 if USE_BF16_MXU else jnp.float32


def _exp_dtype():
    # bf16 VPU/EUP exists on v6e / v7x; keep f32 elementwise math on v5e and older.
    try:
        kind = jax.devices()[0].device_kind.lower()
    except Exception:
        return jnp.float32
    if ("v6" in kind) or ("v7" in kind) or ("tpu7" in kind):
        return jnp.bfloat16
    return jnp.float32


def _cat(cols):
    return cols[0] if len(cols) == 1 else jnp.concatenate(cols, axis=1)


def _select_tiles(N):
    if N <= 1024:
        n_pad = _round_up(N, 128)               # 128 lanes -> no partial-vreg tiles
        tk = n_pad
        tq = n_pad // 2 if n_pad >= 256 else n_pad   # >=2 q-tiles for megacore when possible
    else:
        # Large-N path: big tq cuts xh re-streaming (HBM-bound), tk=512 amortizes
        # the ~0.35us/step grid overhead; VMEM use stays O(MiB) for typical HC.
        tq, tk = 512, 512
        n_pad = _round_up(N, 512)
    tr = tq
    return tq, tk, tr, n_pad


# ----------------------------------------------------------------------------
# Kernel 1: fused-head linear transform + attention-logit projections
#   xh   = x @ W_all      (tr, H*C_out)   MXU, heads fused, one lane-dense store
#   proj = x @ P          (tr, 2H)        MXU (att vectors folded through W), one store
# ----------------------------------------------------------------------------
def gat_transform_kernel(x_ref, w_ref, p_ref, xh_ref, proj_ref):
    cdt = _compute_dtype()
    x = x_ref[...].astype(cdt)                                   # (tr, C_in)
    xh = jnp.dot(x, w_ref[...].astype(cdt),
                 preferred_element_type=jnp.float32)             # (tr, HC) f32 acc
    xh_ref[...] = xh.astype(xh_ref.dtype)
    proj_ref[...] = jnp.dot(x, p_ref[...].astype(cdt),
                            preferred_element_type=jnp.float32)  # (tr, 2H)


# ----------------------------------------------------------------------------
# Kernel 2: flash-style masked-softmax attention + aggregation (all heads)
#   grid = (n_pad // tq, n_pad // tk); reduction (source) axis last / "arbitrary".
#   occ_ref is a scalar-prefetched per-block occupancy table: empty tiles skipped.
# ----------------------------------------------------------------------------
def gat_attn_kernel(occ_ref, adst_ref, asrc_ref, xh_ref, adj_ref, o_ref,
                    m_sc, l_sc, acc_sc, *, heads, c_out, exp_dtype):
    q = pl.program_id(0)
    k = pl.program_id(1)

    @pl.when(k == 0)
    def _init():
        m_sc[...] = jnp.full_like(m_sc, MASK_FILL)
        l_sc[...] = jnp.zeros_like(l_sc)
        acc_sc[...] = jnp.zeros_like(acc_sc)

    @pl.when(occ_ref[q, k] > 0)                       # skip structurally empty tiles
    def _compute():
        cdt = _compute_dtype()
        mask = adj_ref[...] > 0                       # (tq, tk) bool (int8 stream)
        mask_bias = jnp.where(mask, 0.0, MASK_FILL)   # hoisted out of the head loop
        a_dst = adst_ref[...]                         # (tq, H)  row-tile resident
        a_src = asrc_ref[...]                         # (H, tk)
        xh_k = xh_ref[...]                            # (tk, H*C_out)
        m_prev = m_sc[...]                            # (tq, H)
        l_prev = l_sc[...]                            # (tq, H)
        acc_prev = acc_sc[...]                        # (tq, H*C_out)

        m_cols, l_cols, acc_cols = [], [], []
        for h in range(heads):                        # tiny static unroll
            lo, hi = h * c_out, (h + 1) * c_out
            # e[i, j] = LeakyReLU(a_dst[i] + a_src[j]) + mask_bias[i, j]
            e = a_dst[:, h:h + 1] + a_src[h:h + 1, :]             # (tq, tk)
            e = jnp.maximum(e, NEG_SLOPE * e) + mask_bias

            # online (streaming) softmax over source tiles
            m_p = m_prev[:, h:h + 1]
            m_n = jnp.maximum(m_p, jnp.max(e, axis=1, keepdims=True))
            scale = jnp.exp(m_p - m_n)                            # (tq, 1) f32
            p = jnp.exp((e - m_n).astype(exp_dtype))              # bf16 EUP on v6e/v7x
            p = jnp.where(mask, p, 0.0)   # load-bearing: fully-masked rows give exp(0)=1

            l_cols.append(scale * l_prev[:, h:h + 1]
                          + jnp.sum(p, axis=1, keepdims=True, dtype=jnp.float32))
            acc_cols.append(scale * acc_prev[:, lo:hi]
                            + jnp.dot(p.astype(cdt), xh_k[:, lo:hi].astype(cdt),
                                      preferred_element_type=jnp.float32))
            m_cols.append(m_n)

        # ONE full-width (lane-dense) store per state buffer per k-step.
        m_sc[...] = _cat(m_cols)
        l_sc[...] = _cat(l_cols)
        acc_sc[...] = _cat(acc_cols)

    @pl.when(k == pl.num_programs(1) - 1)
    def _finalize():
        l = jnp.maximum(l_sc[...], 1e-20)             # zero-degree guard (no NaN rows)
        inv = pl.reciprocal(l, approx=True)           # (tq, H), EUP slot
        acc = acc_sc[...]
        out_cols = [acc[:, h * c_out:(h + 1) * c_out] * inv[:, h:h + 1]
                    for h in range(heads)]
        o_ref[...] = _cat(out_cols).astype(o_ref.dtype)   # one lane-dense store


# ----------------------------------------------------------------------------
# One GATConv layer (add_self_loops=False) on padded inputs:
#   x_pad (n_pad, C_in) -> (n_pad, H*C_out) if concat else (n_pad, C_out)
# ----------------------------------------------------------------------------
def gat_layer(x_pad, W, att_src, att_dst, bias, adj_pad, occ, *,
              concat, tq, tk, tr, n_pad):
    _, C_in = x_pad.shape
    H, _, C_out = W.shape
    HC = H * C_out
    xh_dtype = _compute_dtype()
    exp_dtype = _exp_dtype()

    # Fuse heads: (H, C_in, C_out) -> (C_in, H*C_out); column h*C_out+c == W[h][:, c].
    W_all = jnp.transpose(W, (1, 0, 2)).reshape(C_in, HC)
    # Fold the attention vectors through W: <x@W_h, att_h> == x @ (W_h @ att_h).
    a_w_src = jnp.einsum('hio,ho->ih', W, att_src[:, 0, :])   # (C_in, H)
    a_w_dst = jnp.einsum('hio,ho->ih', W, att_dst[:, 0, :])   # (C_in, H)
    P = jnp.concatenate([a_w_src, a_w_dst], axis=1)           # (C_in, 2H)

    # --- kernel 1: transform + projections -----------------------------------
    xh, proj = pl.pallas_call(
        gat_transform_kernel,
        out_shape=(jax.ShapeDtypeStruct((n_pad, HC), xh_dtype),
                   jax.ShapeDtypeStruct((n_pad, 2 * H), jnp.float32)),
        grid_spec=pltpu.PrefetchScalarGridSpec(
            num_scalar_prefetch=0,
            grid=(n_pad // tr,),
            in_specs=[
                pl.BlockSpec((tr, C_in), lambda r: (r, 0)),    # x row tile
                pl.BlockSpec((C_in, HC), lambda r: (0, 0)),    # W_all (resident)
                pl.BlockSpec((C_in, 2 * H), lambda r: (0, 0)), # folded att (resident)
            ],
            out_specs=[
                pl.BlockSpec((tr, HC), lambda r: (r, 0)),      # xh
                pl.BlockSpec((tr, 2 * H), lambda r: (r, 0)),   # [a_src | a_dst]
            ],
        ),
        compiler_params=pltpu.CompilerParams(
            dimension_semantics=("parallel",),
            vmem_limit_bytes=VMEM_LIMIT_BYTES),
    )(x_pad, W_all, P)

    a_dst = proj[:, H:]            # (n_pad, H) destination-node logits
    a_src = proj[:, :H].T          # (H, n_pad) source-node logits, lane-dense per head
    # TODO(synk): the a_src transpose could be emitted directly from kernel 1; it is
    #             an O(N*H) op so it is left to XLA here.

    # --- kernel 2: tiled masked-softmax attention + aggregation --------------
    out = pl.pallas_call(
        functools.partial(gat_attn_kernel, heads=H, c_out=C_out, exp_dtype=exp_dtype),
        out_shape=jax.ShapeDtypeStruct((n_pad, HC), jnp.float32),
        grid_spec=pltpu.PrefetchScalarGridSpec(
            num_scalar_prefetch=1,                             # occ table -> SMEM
            grid=(n_pad // tq, n_pad // tk),
            in_specs=[
                pl.BlockSpec((tq, H), lambda q, k, occ: (q, 0)),    # a_dst row tile
                pl.BlockSpec((H, tk), lambda q, k, occ: (0, k)),    # a_src column strip
                pl.BlockSpec((tk, HC), lambda q, k, occ: (k, 0)),   # xh source tile
                pl.BlockSpec((tq, tk), lambda q, k, occ: (q, k)),   # adjacency int8 tile
            ],
            out_specs=pl.BlockSpec((tq, HC), lambda q, k, occ: (q, 0)),
            scratch_shapes=[
                pltpu.VMEM((tq, H), jnp.float32),    # running max
                pltpu.VMEM((tq, H), jnp.float32),    # running denom
                pltpu.VMEM((tq, HC), jnp.float32),   # running accumulator
            ],
        ),
        compiler_params=pltpu.CompilerParams(
            dimension_semantics=("parallel", "arbitrary"),
            vmem_limit_bytes=VMEM_LIMIT_BYTES),
    )(occ, a_dst, a_src, xh, adj_pad)

    if concat:
        y = out                                      # (n_pad, H*C_out), head-major
    else:
        y = out.reshape(n_pad, H, C_out).mean(axis=1)
    return y + bias[None, :]


# ----------------------------------------------------------------------------
# propagate_embeddings (evaluate=True semantics: dropout disabled)
# ----------------------------------------------------------------------------
def propagate_embeddings(Gu, Gi, layers, adj_i8, num_users):
    x = jnp.concatenate([Gu, Gi], axis=0)            # (N, embed_k)
    N = x.shape[0]
    tq, tk, tr, n_pad = _select_tiles(N)

    # Pad features / adjacency ONCE (not per layer).  Padded source nodes are masked
    # out by the zero-padded adjacency; padded destination rows are dropped at the end.
    if n_pad != N:
        x = jnp.pad(x, ((0, n_pad - N), (0, 0)))
        adj_i8 = jnp.pad(adj_i8, ((0, n_pad - N), (0, n_pad - N)))

    # Per-(q,k)-block occupancy table for empty-tile skipping (scalar-prefetched).
    occ = adj_i8.reshape(n_pad // tq, tq, n_pad // tk, tk).max(axis=(1, 3)).astype(jnp.int32)

    for (W, att_src, att_dst, bias, concat) in layers:
        x = gat_layer(x, W, att_src, att_dst, bias, adj_i8, occ,
                      concat=concat, tq=tq, tk=tk, tr=tr, n_pad=n_pad)
    x = x[:N]
    return x[:num_users], x[num_users:]


# ----------------------------------------------------------------------------
# GATModel.forward: xui = sum(gamma_u * gamma_i, axis=1)
# Inputs passed transposed (D, B) so the reduced output (1, B) is lane-dense.
# ----------------------------------------------------------------------------
def score_kernel(gu_t_ref, gi_t_ref, o_ref):
    o_ref[...] = jnp.sum(gu_t_ref[...] * gi_t_ref[...], axis=0, keepdims=True)


def forward_score(gamma_u, gamma_i):
    B, D = gamma_u.shape
    out = pl.pallas_call(
        score_kernel,
        out_shape=jax.ShapeDtypeStruct((1, B), jnp.float32),
        grid=(1,),
        in_specs=[
            pl.BlockSpec((D, B), lambda i: (0, 0)),
            pl.BlockSpec((D, B), lambda i: (0, 0)),
        ],
        out_specs=pl.BlockSpec((1, B), lambda i: (0, 0)),
    )(gamma_u.T, gamma_i.T)
    return out[0]


# ----------------------------------------------------------------------------
# Pure-JAX f32 reference of the same forward pass (for a tolerance check)
# ----------------------------------------------------------------------------
def gat_layer_ref(x, W, att_src, att_dst, bias, adj, *, concat):
    H, _, C_out = W.shape
    mask = adj > 0
    outs = []
    for h in range(H):
        xh = x @ W[h]
        a_s = xh @ att_src[h, 0]
        a_d = xh @ att_dst[h, 0]
        e = a_d[:, None] + a_s[None, :]
        e = jnp.where(e > 0, e, NEG_SLOPE * e)
        e = jnp.where(mask, e, MASK_FILL)
        e = e - jnp.max(e, axis=1, keepdims=True)
        p = jnp.where(mask, jnp.exp(e), 0.0)
        denom = jnp.maximum(jnp.sum(p, axis=1, keepdims=True), 1e-20)
        outs.append((p / denom) @ xh)
    stacked = jnp.stack(outs, axis=1)                       # (N, H, C_out)
    y = stacked.reshape(x.shape[0], H * C_out) if concat else stacked.mean(axis=1)
    return y + bias[None, :]


# ----------------------------------------------------------------------------
# Deterministic parameter construction (synthetic, no checkpoint load)
# ----------------------------------------------------------------------------
def xavier_normal(key, shape):
    fan_out, fan_in = shape[0], shape[1]
    std = (2.0 / (fan_in + fan_out)) ** 0.5
    return std * jax.random.normal(key, shape, dtype=jnp.float32)


def make_gat_params(key, in_channels, out_channels, heads):
    kw, ks, kd = jax.random.split(key, 3)
    std = (2.0 / (in_channels + heads * out_channels)) ** 0.5
    W = std * jax.random.normal(kw, (heads, in_channels, out_channels), dtype=jnp.float32)
    att_src = 0.1 * jax.random.normal(ks, (heads, 1, out_channels), dtype=jnp.float32)
    att_dst = 0.1 * jax.random.normal(kd, (heads, 1, out_channels), dtype=jnp.float32)
    return W, att_src, att_dst


if __name__ == "__main__":
    key = jax.random.PRNGKey(0)
    k_gu, k_gi, k_l0, k_l1 = jax.random.split(key, 4)

    # Small, module-consistent shapes.
    num_users, num_items, embed_k = 6, 10, 8
    N = num_users + num_items
    weight_size = [8, 8]
    heads = [2, 1]

    # User / item embeddings (xavier-normal, deterministic).
    Gu = xavier_normal(k_gu, (num_users, embed_k))
    Gi = xavier_normal(k_gi, (num_items, embed_k))

    # Dense bipartite adjacency mask as int8 (every user <-> every item); no self loops.
    A = jnp.zeros((N, N), dtype=jnp.int8)
    A = A.at[:num_users, num_users:].set(1)
    A = A.at[num_users:, :num_users].set(1)

    # GATConv layer parameters.
    W0, as0, ad0 = make_gat_params(k_l0, embed_k, weight_size[0], heads[0])
    b0 = jnp.zeros((heads[0] * weight_size[0],), dtype=jnp.float32)
    W1, as1, ad1 = make_gat_params(k_l1, weight_size[0] * heads[0], weight_size[1], heads[1])
    b1 = jnp.zeros((weight_size[1],), dtype=jnp.float32)

    layers = [
        (W0, as0, ad0, b0, True),    # concat=True
        (W1, as1, ad1, b1, False),   # last layer: concat=False
    ]
    gu_all, gi_all = propagate_embeddings(Gu, Gi, layers, A, num_users)

    # forward(): batched user/item scores xui = sum(gamma_u * gamma_i, 1)
    users = jnp.array([0, 1, 2, 3], dtype=jnp.int32)
    pos_items = jnp.array([1, 3, 5, 7], dtype=jnp.int32)
    gamma_u = gu_all[users]
    gamma_i = gi_all[pos_items]

    xui = forward_score(gamma_u, gamma_i)
    xui = jax.block_until_ready(xui)

    # Full-pipeline correctness check against a plain-JAX f32 reference
    # (loose tolerance accounts for bf16 MXU operands / bf16 exp in the kernels).
    xr = jnp.concatenate([Gu, Gi], axis=0)
    xr = gat_layer_ref(xr, W0, as0, ad0, b0, A, concat=True)
    xr = gat_layer_ref(xr, W1, as1, ad1, b1, A, concat=False)
    ref = jnp.sum(xr[:num_users][users] * xr[num_users:][pos_items], axis=1)

    assert xui.shape == (4,)
    assert jnp.allclose(xui, ref, atol=5e-2, rtol=5e-2), (xui, ref)

    print("KERNEL_OK")
</pallas_src>

<mosaic_0001>
module attributes {stable_mosaic.version = 11 : i64} {
  func.func @gat_transform_kernel(%arg0: i32, %arg1: memref<128x8xf32, #tpu.memory_space<vmem>>, %arg2: memref<8x16xf32, #tpu.memory_space<vmem>>, %arg3: memref<8x4xf32, #tpu.memory_space<vmem>>, %arg4: memref<128x16xbf16, #tpu.memory_space<vmem>>, %arg5: memref<128x4xf32, #tpu.memory_space<vmem>>) attributes {dimension_semantics = [#tpu.dimension_semantics<parallel>], iteration_bounds = array<i64: 1>, scalar_prefetch = 0 : i64, scratch_operands = 0 : i64, tpu.core_type = #tpu.core_type<tc>, window_params = [{transform_indices = @transform_0, window_bounds = array<i64: 128, 8>}, {pipeline_mode = #tpu.pipeline_mode<synchronous>, transform_indices = @transform_1, window_bounds = array<i64: 8, 16>}, {pipeline_mode = #tpu.pipeline_mode<synchronous>, transform_indices = @transform_2, window_bounds = array<i64: 8, 4>}, {transform_indices = @transform_3, window_bounds = array<i64: 128, 16>}, {transform_indices = @transform_4, window_bounds = array<i64: 128, 4>}]} {
    %c0 = arith.constant 0 : index
    %c0_0 = arith.constant 0 : index
    %0 = vector.load %arg1[%c0, %c0_0] : memref<128x8xf32, #tpu.memory_space<vmem>>, vector<128x8xf32>
    %1 = arith.truncf %0 : vector<128x8xf32> to vector<128x8xbf16>
    %c0_1 = arith.constant 0 : index
    %c0_2 = arith.constant 0 : index
    %2 = vector.load %arg2[%c0_1, %c0_2] : memref<8x16xf32, #tpu.memory_space<vmem>>, vector<8x16xf32>
    %3 = arith.truncf %2 : vector<8x16xf32> to vector<8x16xbf16>
    %cst = arith.constant dense<0.000000e+00> : vector<128x16xf32>
    %4 = tpu.matmul %1, %3, %cst {dimension_numbers = #tpu.dot_dimension_numbers<[1], [0], [0], [1], [0, 0, 1, 1], [], []>} : vector<128x8xbf16>, vector<8x16xbf16>, vector<128x16xf32> -> vector<128x16xf32>
    %5 = arith.truncf %4 : vector<128x16xf32> to vector<128x16xbf16>
    %c0_3 = arith.constant 0 : index
    %c0_4 = arith.constant 0 : index
    %6 = vector.load %arg4[%c0_3, %c0_4] : memref<128x16xbf16, #tpu.memory_space<vmem>>, vector<128x16xbf16>
    tpu.vector_store %arg4[%c0_3, %c0_4], %5 {strides = array<i32>} : memref<128x16xbf16, #tpu.memory_space<vmem>>, vector<128x16xbf16>,
    %c0_5 = arith.constant 0 : index
    %c0_6 = arith.constant 0 : index
    %7 = vector.load %arg3[%c0_5, %c0_6] : memref<8x4xf32, #tpu.memory_space<vmem>>, vector<8x4xf32>
    %8 = arith.truncf %7 : vector<8x4xf32> to vector<8x4xbf16>
    %cst_7 = arith.constant dense<0.000000e+00> : vector<128x4xf32>
    %9 = tpu.matmul %1, %8, %cst_7 {dimension_numbers = #tpu.dot_dimension_numbers<[1], [0], [0], [1], [0, 0, 1, 1], [], []>} : vector<128x8xbf16>, vector<8x4xbf16>, vector<128x4xf32> -> vector<128x4xf32>
    %c0_8 = arith.constant 0 : index
    %c0_9 = arith.constant 0 : index
    %10 = vector.load %arg5[%c0_8, %c0_9] : memref<128x4xf32, #tpu.memory_space<vmem>>, vector<128x4xf32>
    tpu.vector_store %arg5[%c0_8, %c0_9], %9 {strides = array<i32>} : memref<128x4xf32, #tpu.memory_space<vmem>>, vector<128x4xf32>,
    return
  }
  func.func @transform_0(%arg0: i32) -> (i32, i32) {
    %c0_i32 = arith.constant 0 : i32
    %c0_i32_0 = arith.constant 0 : i32
    return %arg0, %c0_i32 : i32, i32
  }
  func.func @transform_1(%arg0: i32) -> (i32, i32) {
    %c0_i32 = arith.constant 0 : i32
    %c0_i32_0 = arith.constant 0 : i32
    %c0_i32_1 = arith.constant 0 : i32
    return %c0_i32, %c0_i32_0 : i32, i32
  }
  func.func @transform_2(%arg0: i32) -> (i32, i32) {
    %c0_i32 = arith.constant 0 : i32
    %c0_i32_0 = arith.constant 0 : i32
    %c0_i32_1 = arith.constant 0 : i32
    return %c0_i32, %c0_i32_0 : i32, i32
  }
  func.func @transform_3(%arg0: i32) -> (i32, i32) {
    %c0_i32 = arith.constant 0 : i32
    %c0_i32_0 = arith.constant 0 : i32
    return %arg0, %c0_i32 : i32, i32
  }
  func.func @transform_4(%arg0: i32) -> (i32, i32) {
    %c0_i32 = arith.constant 0 : i32
    %c0_i32_0 = arith.constant 0 : i32
    return %arg0, %c0_i32 : i32, i32
  }
}

</mosaic_0001>

<llo_original>
// kernel: tpu_custom_call.1
$region0: #{tpu_custom_call.1}
  #allocation0 [shape = 'u32[]', space=smem, size = 0x4, offset = 0x4, fixed_abs, tag = 'smem constant byte address 0x4 - core index']
  #allocation1 [shape = 'u32[72,128]{1,0:T(1,128)}', space=vmem, size = 0x9000, scoped, tag = 'internal scratch']
  %s0 = inlined_call_operand.vmem [shape: f32[128,8], index: 0, kind: input, shape index: {}]
  %s1 = inlined_call_operand.vmem [shape: f32[8,16], index: 1, kind: input, shape index: {}]
  %s2 = inlined_call_operand.vmem [shape: f32[8,4], index: 2, kind: input, shape index: {}]
  %s3 = inlined_call_operand.vmem [shape: bf16[128,16], index: 3, kind: output, shape index: {0}]
  %s4 = inlined_call_operand.vmem [shape: f32[128,4], index: 4, kind: output, shape index: {1}]
  %5 = xla_tuple %s3, %s4
  %s6 = sld [smem:[#allocation0]]
  $region30: #{tpu_custom_call.1} parent=0
    _
  %s8 = ssub.s32 1, %s6
  %s9 = scalar_select 0, %s8, %s6
  // Predicated region
  $region2: #{tpu_custom_call.1} parent=0 // pred_check
    _
  $region3: #{tpu_custom_call.1} parent=0 // pred_check_branch
    %11 = sbr.rel (0) target = $region5
  $region4: #{tpu_custom_call.1} parent=0 // pred_region
    _
  $region5: #{tpu_custom_call.1} parent=0 // pred_fallthru
    _
  // Predicated region
  $region6: #{tpu_custom_call.1} parent=0 // pred_check
    _
  $region7: #{tpu_custom_call.1} parent=0 // pred_check_branch
    %13 = sbr.rel (0) target = $region9
  $region8: #{tpu_custom_call.1} parent=0 // pred_region
    _
  $region9: #{tpu_custom_call.1} parent=0 // pred_fallthru
    _
  // Predicated region
  $region10: #{tpu_custom_call.1} parent=0 // pred_check
    _
  $region11: #{tpu_custom_call.1} parent=0 // pred_check_branch
    %15 = sbr.rel (0) target = $region13
  $region12: #{tpu_custom_call.1} parent=0 // pred_region
    _
  $region13: #{tpu_custom_call.1} parent=0 // pred_fallthru
    _
  %v17 = vld [vmem:[%s0] sm:$0xff]
  %v18 = vld [vmem:[%s0 + $0x8] sm:$0xff]
  %v19 = vld [vmem:[%s0 + $0x10] sm:$0xff]
  %v20 = vld [vmem:[%s0 + $0x18] sm:$0xff]
  %v21 = vld [vmem:[%s0 + $0x20] sm:$0xff]
  %v22 = vld [vmem:[%s0 + $0x28] sm:$0xff]
  %v23 = vld [vmem:[%s0 + $0x30] sm:$0xff]
  %v24 = vld [vmem:[%s0 + $0x38] sm:$0xff]
  %v25 = vld [vmem:[%s0 + $0x40] sm:$0xff]
  %v26 = vld [vmem:[%s0 + $0x48] sm:$0xff]
  %v27 = vld [vmem:[%s0 + $0x50] sm:$0xff]
  %v28 = vld [vmem:[%s0 + $0x58] sm:$0xff]
  %v29 = vld [vmem:[%s0 + $0x60] sm:$0xff]
  %v30 = vld [vmem:[%s0 + $0x68] sm:$0xff]
  %v31 = vld [vmem:[%s0 + $0x70] sm:$0xff]
  %v32 = vld [vmem:[%s0 + $0x78] sm:$0xff]
  %v33 = vpack.c.bf16 %v18, %v17
  %v34 = vpack.c.bf16 %v20, %v19
  %v35 = vpack.c.bf16 %v22, %v21
  %v36 = vpack.c.bf16 %v24, %v23
  %v37 = vpack.c.bf16 %v26, %v25
  %v38 = vpack.c.bf16 %v28, %v27
  %v39 = vpack.c.bf16 %v30, %v29
  %v40 = vpack.c.bf16 %v32, %v31
  %v41 = vld [vmem:[%s1] sm:$0xff]
  %v42 = vpack.c.bf16 %v41, %v41
  %vm43 = vcmask 64512
  %v45 = vsel %vm43, %v33, 0
  %v48 = vsel %vm43, %v34, 0
  %v51 = vsel %vm43, %v35, 0
  %v54 = vsel %vm43, %v36, 0
  %v57 = vsel %vm43, %v37, 0
  %v60 = vsel %vm43, %v38, 0
  %v63 = vsel %vm43, %v39, 0
  %v66 = vsel %vm43, %v40, 0
  %vm68 = vcmask 1043456
  %v70 = vsel %vm68, %v42, 0
  %72 = vmatpush.bf16.msra.mxu0 0
  %73 = vmatpush.bf16.msra.mxu0 0
  %74 = vmatpush.bf16.msra.mxu0 0
  %75 = vmatpush.bf16.msra.mxu0 0
  %76 = vmatpush.bf16.msra.mxu0 0
  %77 = vmatpush.bf16.msra.mxu0 0
  %78 = vmatpush.bf16.msra.mxu0 0
  %79 = vmatpush.bf16.msra.mxu0 %v70
  %80 = vmatmul.bf16.gmra.mxu0 %v45
  %v81 = vpop.f32.mrf.mxu0
  %v82 = vadd.f32 0.0, %v81
  %v83 = vpop.f32.mrf.mxu0
  %v84 = vadd.f32 0.0, %v83
  %85 = vmatmul.bf16.gmra.mxu0 %v48
  %v86 = vpop.f32.mrf.mxu0
  %v87 = vadd.f32 0.0, %v86
  %v88 = vpop.f32.mrf.mxu0
  %v89 = vadd.f32 0.0, %v88
  %90 = vmatmul.bf16.gmra.mxu0 %v51
  %v91 = vpop.f32.mrf.mxu0
  %v92 = vadd.f32 0.0, %v91
  %v93 = vpop.f32.mrf.mxu0
  %v94 = vadd.f32 0.0, %v93
  %95 = vmatmul.bf16.gmra.mxu0 %v54
  %v96 = vpop.f32.mrf.mxu0
  %v97 = vadd.f32 0.0, %v96
  %v98 = vpop.f32.mrf.mxu0
  %v99 = vadd.f32 0.0, %v98
  %100 = vmatmul.bf16.gmra.mxu0 %v57
  %v101 = vpop.f32.mrf.mxu0
  %v102 = vadd.f32 0.0, %v101
  %v103 = vpop.f32.mrf.mxu0
  %v104 = vadd.f32 0.0, %v103
  %105 = vmatmul.bf16.gmra.mxu0 %v60
  %v106 = vpop.f32.mrf.mxu0
  %v107 = vadd.f32 0.0, %v106
  %v108 = vpop.f32.mrf.mxu0
  %v109 = vadd.f32 0.0, %v108
  %110 = vmatmul.bf16.gmra.mxu0 %v63
  %v111 = vpop.f32.mrf.mxu0
  %v112 = vadd.f32 0.0, %v111
  %v113 = vpop.f32.mrf.mxu0
  %v114 = vadd.f32 0.0, %v113
  %115 = vmatmul.bf16.gmra.mxu0 %v66
  %v116 = vpop.f32.mrf.mxu0
  %v117 = vadd.f32 0.0, %v116
  %v118 = vpop.f32.mrf.mxu0
  %v119 = vadd.f32 0.0, %v118
  %120 = vdwg.mxu0
  %v121 = vpack.c.bf16 %v82, %v82
  %v122 = vpack.c.bf16 %v84, %v84
  %v123 = vpack.c.bf16 %v87, %v87
  %v124 = vpack.c.bf16 %v89, %v89
  %v125 = vpack.c.bf16 %v92, %v92
  %v126 = vpack.c.bf16 %v94, %v94
  %v127 = vpack.c.bf16 %v97, %v97
  %v128 = vpack.c.bf16 %v99, %v99
  %v129 = vpack.c.bf16 %v102, %v102
  %v130 = vpack.c.bf16 %v104, %v104
  %v131 = vpack.c.bf16 %v107, %v107
  %v132 = vpack.c.bf16 %v109, %v109
  %v133 = vpack.c.bf16 %v112, %v112
  %v134 = vpack.c.bf16 %v114, %v114
  %v135 = vpack.c.bf16 %v117, %v117
  %v136 = vpack.c.bf16 %v119, %v119
  %vm137 = vcmask 125952
  %138 = vst.msk [vmem:[%s3] sm:$0xf] %vm137, %v121
  %139 = vst.msk [vmem:[%s3 + $0x4] sm:$0xf] %vm137, %v122
  %140 = vst.msk [vmem:[%s3 + $0x8] sm:$0xf] %vm137, %v123
  %141 = vst.msk [vmem:[%s3 + $0xc] sm:$0xf] %vm137, %v124
  %142 = vst.msk [vmem:[%s3 + $0x10] sm:$0xf] %vm137, %v125
  %143 = vst.msk [vmem:[%s3 + $0x14] sm:$0xf] %vm137, %v126
  %144 = vst.msk [vmem:[%s3 + $0x18] sm:$0xf] %vm137, %v127
  %145 = vst.msk [vmem:[%s3 + $0x1c] sm:$0xf] %vm137, %v128
  %146 = vst.msk [vmem:[%s3 + $0x20] sm:$0xf] %vm137, %v129
  %147 = vst.msk [vmem:[%s3 + $0x24] sm:$0xf] %vm137, %v130
  %148 = vst.msk [vmem:[%s3 + $0x28] sm:$0xf] %vm137, %v131
  %149 = vst.msk [vmem:[%s3 + $0x2c] sm:$0xf] %vm137, %v132
  %150 = vst.msk [vmem:[%s3 + $0x30] sm:$0xf] %vm137, %v133
  %151 = vst.msk [vmem:[%s3 + $0x34] sm:$0xf] %vm137, %v134
  %152 = vst.msk [vmem:[%s3 + $0x38] sm:$0xf] %vm137, %v135
  %153 = vst.msk [vmem:[%s3 + $0x3c] sm:$0xf] %vm137, %v136
  %v154 = vld [vmem:[%s2] sm:$0xff]
  %v155 = vpack.c.bf16 %v154, %v154
  %v157 = vsel %vm68, %v155, 0
  %159 = vmatpush.bf16.msra.mxu0 0
  %160 = vmatpush.bf16.msra.mxu0 0
  %161 = vmatpush.bf16.msra.mxu0 0
  %162 = vmatpush.bf16.msra.mxu0 0
  %163 = vmatpush.bf16.msra.mxu0 0
  %164 = vmatpush.bf16.msra.mxu0 0
  %165 = vmatpush.bf16.msra.mxu0 0
  %166 = vmatpush.bf16.msra.mxu0 %v157
  %167 = vmatmul.bf16.gmra.mxu0 %v45
  %v168 = vpop.f32.mrf.mxu0
  %v169 = vadd.f32 0.0, %v168
  %v170 = vpop.f32.mrf.mxu0
  %v171 = vadd.f32 0.0, %v170
  %172 = vmatmul.bf16.gmra.mxu0 %v48
  %v173 = vpop.f32.mrf.mxu0
  %v174 = vadd.f32 0.0, %v173
  %v175 = vpop.f32.mrf.mxu0
  %v176 = vadd.f32 0.0, %v175
  %177 = vmatmul.bf16.gmra.mxu0 %v51
  %v178 = vpop.f32.mrf.mxu0
  %v179 = vadd.f32 0.0, %v178
  %v180 = vpop.f32.mrf.mxu0
  %v181 = vadd.f32 0.0, %v180
  %182 = vmatmul.bf16.gmra.mxu0 %v54
  %v183 = vpop.f32.mrf.mxu0
  %v184 = vadd.f32 0.0, %v183
  %v185 = vpop.f32.mrf.mxu0
  %v186 = vadd.f32 0.0, %v185
  %187 = vmatmul.bf16.gmra.mxu0 %v57
  %v188 = vpop.f32.mrf.mxu0
  %v189 = vadd.f32 0.0, %v188
  %v190 = vpop.f32.mrf.mxu0
  %v191 = vadd.f32 0.0, %v190
  %192 = vmatmul.bf16.gmra.mxu0 %v60
  %v193 = vpop.f32.mrf.mxu0
  %v194 = vadd.f32 0.0, %v193
  %v195 = vpop.f32.mrf.mxu0
  %v196 = vadd.f32 0.0, %v195
  %197 = vmatmul.bf16.gmra.mxu0 %v63
  %v198 = vpop.f32.mrf.mxu0
  %v199 = vadd.f32 0.0, %v198
  %v200 = vpop.f32.mrf.mxu0
  %v201 = vadd.f32 0.0, %v200
  %202 = vmatmul.bf16.gmra.mxu0 %v66
  %v203 = vpop.f32.mrf.mxu0
  %v204 = vadd.f32 0.0, %v203
  %v205 = vpop.f32.mrf.mxu0
  %v206 = vadd.f32 0.0, %v205
  %207 = vdwg.mxu0
  %vm208 = vcmask 31744
  %209 = vst.msk [vmem:[%s4] sm:$0xff] %vm208, %v169
  %210 = vst.msk [vmem:[%s4 + $0x8] sm:$0xff] %vm208, %v171
  %211 = vst.msk [vmem:[%s4 + $0x10] sm:$0xff] %vm208, %v174
  %212 = vst.msk [vmem:[%s4 + $0x18] sm:$0xff] %vm208, %v176
  %213 = vst.msk [vmem:[%s4 + $0x20] sm:$0xff] %vm208, %v179
  %214 = vst.msk [vmem:[%s4 + $0x28] sm:$0xff] %vm208, %v181
  %215 = vst.msk [vmem:[%s4 + $0x30] sm:$0xff] %vm208, %v184
  %216 = vst.msk [vmem:[%s4 + $0x38] sm:$0xff] %vm208, %v186
  %217 = vst.msk [vmem:[%s4 + $0x40] sm:$0xff] %vm208, %v189
  %218 = vst.msk [vmem:[%s4 + $0x48] sm:$0xff] %vm208, %v191
  %219 = vst.msk [vmem:[%s4 + $0x50] sm:$0xff] %vm208, %v194
  %220 = vst.msk [vmem:[%s4 + $0x58] sm:$0xff] %vm208, %v196
  %221 = vst.msk [vmem:[%s4 + $0x60] sm:$0xff] %vm208, %v199
  %222 = vst.msk [vmem:[%s4 + $0x68] sm:$0xff] %vm208, %v201
  %223 = vst.msk [vmem:[%s4 + $0x70] sm:$0xff] %vm208, %v204
  %224 = vst.msk [vmem:[%s4 + $0x78] sm:$0xff] %vm208, %v206
  // Predicated region
  $region14: #{tpu_custom_call.1} parent=0 // pred_check
    _
  $region15: #{tpu_custom_call.1} parent=0 // pred_check_branch
    %226 = sbr.rel (0) target = $region17
  $region16: #{tpu_custom_call.1} parent=0 // pred_region
    _
  $region17: #{tpu_custom_call.1} parent=0 // pred_fallthru
    _
  // Predicated region
  $region18: #{tpu_custom_call.1} parent=0 // pred_check
    _
  $region19: #{tpu_custom_call.1} parent=0 // pred_check_branch
    %228 = sbr.rel (0) target = $region21
  $region20: #{tpu_custom_call.1} parent=0 // pred_region
    _
  $region21: #{tpu_custom_call.1} parent=0 // pred_fallthru
    _
  // Predicated region
  $region22: #{tpu_custom_call.1} parent=0 // pred_check
    _
  $region23: #{tpu_custom_call.1} parent=0 // pred_check_branch
    %230 = sbr.rel (0) target = $region25
  $region24: #{tpu_custom_call.1} parent=0 // pred_region
    _
  $region25: #{tpu_custom_call.1} parent=0 // pred_fallthru
    _
  // Predicated region
  $region26: #{tpu_custom_call.1} parent=0 // pred_check
    _
  $region27: #{tpu_custom_call.1} parent=0 // pred_check_branch
    %232 = sbr.rel (0) target = $region29
  $region28: #{tpu_custom_call.1} parent=0 // pred_region
    _
  $region29: #{tpu_custom_call.1} parent=0 // pred_fallthru
    _

</llo_original>
